<compile_context>
chip_gen: v7x
topology: tpu7x:2x2x1
jax: 0.10.0
libtpu: 0.0.40
codegen_flags: <defaults>
</compile_context>

<pallas_src>
import functools

import jax
import jax.numpy as jnp
from jax import lax
from jax.experimental import pallas as pl
from jax.experimental.pallas import tpu as pltpu


def _round_up(n, m):
    return ((n + m - 1) // m) * m


def lstm_seq_kernel(x_ref, wih_ref, whh_ref, b_ref, h_out_ref, xproj_ref, *,
                    seq_len, batch_pad, gate_stride, gates_width, matmul_dtype):
    """Full LSTM recurrence over a VMEM-resident sequence.

    x_ref:     (T*BP, IP)  time-major, zero-padded inputs (matmul_dtype)
    wih_ref:   (IP, NG)    packed W_ih^T (gate g -> lanes [g*GS, g*GS+H))
    whh_ref:   (GS, NG)    packed W_hh^T
    b_ref:     (1, NG)     folded b_ih + b_hh (f32)
    h_out_ref: (BP, GS)    last hidden state, f32
    xproj_ref: (T*BP, NG)  f32 scratch for the precomputed input projection
    """
    bp, gs, ng = batch_pad, gate_stride, gates_width

    # ---- prologue: input projection for every timestep in one MXU pass ----
    # (off the serial chain; M = T*BP for decent MXU utilization)
    xproj_ref[...] = (
        jnp.dot(x_ref[...], wih_ref[...], preferred_element_type=jnp.float32)
        + b_ref[...])

    whh = whh_ref[...]                       # resident recurrent weights

    fused_act = ng <= 128                    # all 4 gates live in one vreg
    if fused_act:
        lane = lax.broadcasted_iota(jnp.int32, (bp, ng), 1)
        g_mask = (lane >= 2 * gs) & (lane < 3 * gs)   # tanh block (g gate)

    h = jnp.zeros((bp, gs), jnp.float32)     # recurrent carries stay f32
    c = jnp.zeros((bp, gs), jnp.float32)

    # seq_len is small & static -> trace-time full unroll (no grid / loop
    # overhead).  TODO(synk): time-block + fori_loop for long sequences.
    for t in range(seq_len):
        xp = xproj_ref[pl.ds(t * bp, bp), :]                       # (BP, NG)
        gates = xp + jnp.dot(h.astype(matmul_dtype), whh,
                             preferred_element_type=jnp.float32)   # (BP, NG)
        if fused_act:
            # one sigmoid + one tanh over the packed vreg, lane-mask select
            acts = jnp.where(g_mask, jnp.tanh(gates), jax.nn.sigmoid(gates))
            i_g = acts[:, 0 * gs:1 * gs]
            f_g = acts[:, 1 * gs:2 * gs]
            g_g = acts[:, 2 * gs:3 * gs]
            o_g = acts[:, 3 * gs:4 * gs]
        else:
            i_g = jax.nn.sigmoid(gates[:, 0 * gs:1 * gs])
            f_g = jax.nn.sigmoid(gates[:, 1 * gs:2 * gs])
            g_g = jnp.tanh(gates[:, 2 * gs:3 * gs])
            o_g = jax.nn.sigmoid(gates[:, 3 * gs:4 * gs])
        c = f_g * c + i_g * g_g
        h = o_g * jnp.tanh(c)

    h_out_ref[...] = h


@functools.partial(jax.jit, static_argnames=("matmul_dtype",))
def lstm_regressor_forward(x, params, matmul_dtype=jnp.float32):
    """x: (B, T, I) float32, PyTorch batch_first layout. Returns (B,) float32."""
    w_ih, w_hh, b_ih, b_hh, w_fc, b_fc = params
    B, T, I = x.shape
    H = w_hh.shape[1]

    # Gate layout: packed (stride H) when all four gates fit in one 128-lane
    # vreg, else 128-lane-aligned per-gate blocks.
    GS = H if 4 * H <= 128 else _round_up(H, 128)   # gate stride == h/c width
    NG = _round_up(4 * GS, 128)                     # gate-matmul output lanes
    IP = _round_up(I, 128)                          # lane-aligned input size
    BP = _round_up(max(B, 8), 8)                    # fill the sublane dim

    def pack_gates(w_t, rows_to):
        # (K, 4H) -> (rows_to, NG); gate g's H columns land at [g*GS, g*GS+H)
        k = w_t.shape[0]
        w4 = jnp.pad(w_t.reshape(k, 4, H), ((0, 0), (0, 0), (0, GS - H)))
        w2 = w4.reshape(k, 4 * GS)
        return jnp.pad(w2, ((0, rows_to - k), (0, NG - 4 * GS)))

    wih_p = pack_gates(w_ih.T, IP).astype(matmul_dtype)          # (IP, NG)
    whh_p = pack_gates(w_hh.T, GS).astype(matmul_dtype)          # (GS, NG)

    bias = jnp.pad((b_ih + b_hh).reshape(4, H), ((0, 0), (0, GS - H)))
    bias = jnp.pad(bias.reshape(1, 4 * GS), ((0, 0), (0, NG - 4 * GS)))
    bias = bias.astype(jnp.float32)                              # (1, NG)

    # time-major, padded, flattened for the one-shot input projection
    x_p = jnp.pad(x, ((0, BP - B), (0, 0), (0, IP - I)))
    x_p = jnp.transpose(x_p, (1, 0, 2)).reshape(T * BP, IP).astype(matmul_dtype)

    itemsize = jnp.dtype(matmul_dtype).itemsize
    vmem_bytes = int(
        2 * ((T * BP * IP + IP * NG + GS * NG) * itemsize        # double-buffered ins
             + NG * 4 + BP * GS * 4)                             # bias + out
        + T * BP * NG * 4                                        # xproj scratch
        + (2 << 20))                                             # Mosaic headroom

    kernel = functools.partial(
        lstm_seq_kernel, seq_len=T, batch_pad=BP, gate_stride=GS,
        gates_width=NG, matmul_dtype=matmul_dtype)

    h_last = pl.pallas_call(
        kernel,
        out_shape=jax.ShapeDtypeStruct((BP, GS), jnp.float32),
        grid_spec=pltpu.PrefetchScalarGridSpec(
            num_scalar_prefetch=0,
            grid=(1,),
            in_specs=[
                pl.BlockSpec((T * BP, IP), lambda i: (0, 0)),    # x (time-major)
                pl.BlockSpec((IP, NG), lambda i: (0, 0)),        # packed W_ih^T
                pl.BlockSpec((GS, NG), lambda i: (0, 0)),        # packed W_hh^T
                pl.BlockSpec((1, NG), lambda i: (0, 0)),         # fused bias
            ],
            out_specs=pl.BlockSpec((BP, GS), lambda i: (0, 0)),
            scratch_shapes=[pltpu.VMEM((T * BP, NG), jnp.float32)],
        ),
        compiler_params=pltpu.CompilerParams(
            dimension_semantics=("arbitrary",),
            vmem_limit_bytes=vmem_bytes),
    )(x_p, wih_p, whh_p, bias)

    # fc(out[:, -1, :]).squeeze() done in XLA on the last hidden state.
    h_real = h_last[:B, :H]
    return (h_real @ w_fc.T + b_fc)[:, 0]


def init_params(key, input_size, hidden_size):
    """PyTorch-layout params with uniform(-1/sqrt(H), 1/sqrt(H)) init."""
    k = 1.0 / jnp.sqrt(jnp.float32(hidden_size))
    ks = jax.random.split(key, 6)
    w_ih = jax.random.uniform(ks[0], (4 * hidden_size, input_size),
                              jnp.float32, -k, k)
    w_hh = jax.random.uniform(ks[1], (4 * hidden_size, hidden_size),
                              jnp.float32, -k, k)
    b_ih = jax.random.uniform(ks[2], (4 * hidden_size,), jnp.float32, -k, k)
    b_hh = jax.random.uniform(ks[3], (4 * hidden_size,), jnp.float32, -k, k)
    w_fc = jax.random.uniform(ks[4], (1, hidden_size), jnp.float32, -k, k)
    b_fc = jax.random.uniform(ks[5], (1,), jnp.float32, -k, k)
    return w_ih, w_hh, b_ih, b_hh, w_fc, b_fc


def reference_forward(x, params):
    """Pure-JAX reference (PyTorch nn.LSTM semantics) for verification."""
    w_ih, w_hh, b_ih, b_hh, w_fc, b_fc = params
    B, T, I = x.shape
    H = w_hh.shape[1]
    wih_t, whh_t = w_ih.T, w_hh.T
    bias = b_ih + b_hh

    def step(carry, x_t):
        h, c = carry
        gates = x_t @ wih_t + h @ whh_t + bias
        i_g = jax.nn.sigmoid(gates[:, 0 * H:1 * H])
        f_g = jax.nn.sigmoid(gates[:, 1 * H:2 * H])
        g_g = jnp.tanh(gates[:, 2 * H:3 * H])
        o_g = jax.nn.sigmoid(gates[:, 3 * H:4 * H])
        c = f_g * c + i_g * g_g
        h = o_g * jnp.tanh(c)
        return (h, c), None

    h0 = jnp.zeros((B, H), jnp.float32)
    c0 = jnp.zeros((B, H), jnp.float32)
    (h_last, _), _ = lax.scan(step, (h0, c0), jnp.transpose(x, (1, 0, 2)))
    return (h_last @ w_fc.T + b_fc)[:, 0]


if __name__ == "__main__":
    B, T, INPUT_SIZE, HIDDEN = 2, 8, 4, 32

    key = jax.random.PRNGKey(0)
    kx, kp = jax.random.split(key)
    x = jax.random.normal(kx, (B, T, INPUT_SIZE), jnp.float32)
    params = init_params(kp, INPUT_SIZE, HIDDEN)

    y_ref = reference_forward(x, params)

    # Default f32 path (packed-gate kernel, 4*H = 128): tight check.
    y = jax.block_until_ready(lstm_regressor_forward(x, params))
    assert y.shape == (B,)
    assert jnp.allclose(y, y_ref, atol=1e-4, rtol=1e-4), (y, y_ref)

    # bf16 matmul operands only (weights + matmul inputs); h/c and all
    # elementwise / transcendental math stay f32.
    y_bf16 = jax.block_until_ready(
        lstm_regressor_forward(x, params, matmul_dtype=jnp.bfloat16))
    assert jnp.allclose(y_bf16, y_ref, atol=5e-2, rtol=5e-2), (y_bf16, y_ref)

    # hidden=64 (the module's default) exercises the 128-lane-aligned
    # per-gate fallback path.
    params64 = init_params(kp, INPUT_SIZE, 64)
    y64_ref = reference_forward(x, params64)
    y64 = jax.block_until_ready(lstm_regressor_forward(x, params64))
    assert jnp.allclose(y64, y64_ref, atol=1e-4, rtol=1e-4), (y64, y64_ref)

    print("KERNEL_OK")
</pallas_src>

<mosaic_0001>
module attributes {stable_mosaic.version = 11 : i64} {
  func.func @lstm_seq_kernel(%arg0: i32, %arg1: memref<64x128xf32, #tpu.memory_space<vmem>>, %arg2: memref<128x128xf32, #tpu.memory_space<vmem>>, %arg3: memref<32x128xf32, #tpu.memory_space<vmem>>, %arg4: memref<1x128xf32, #tpu.memory_space<vmem>>, %arg5: memref<8x32xf32, #tpu.memory_space<vmem>>, %arg6: memref<64x128xf32, #tpu.memory_space<vmem>>) attributes {dimension_semantics = [#tpu.dimension_semantics<arbitrary>], iteration_bounds = array<i64: 1>, scalar_prefetch = 0 : i64, scratch_operands = 1 : i64, tpu.core_type = #tpu.core_type<tc>, window_params = [{pipeline_mode = #tpu.pipeline_mode<synchronous>, transform_indices = @transform_0, window_bounds = array<i64: 64, 128>}, {pipeline_mode = #tpu.pipeline_mode<synchronous>, transform_indices = @transform_1, window_bounds = array<i64: 128, 128>}, {pipeline_mode = #tpu.pipeline_mode<synchronous>, transform_indices = @transform_2, window_bounds = array<i64: 32, 128>}, {pipeline_mode = #tpu.pipeline_mode<synchronous>, transform_indices = @transform_3, window_bounds = array<i64: 1, 128>}, {pipeline_mode = #tpu.pipeline_mode<synchronous>, transform_indices = @transform_4, window_bounds = array<i64: 8, 32>}]} {
    %c0 = arith.constant 0 : index
    %c0_0 = arith.constant 0 : index
    %0 = vector.load %arg1[%c0, %c0_0] : memref<64x128xf32, #tpu.memory_space<vmem>>, vector<64x128xf32>
    %c0_1 = arith.constant 0 : index
    %c0_2 = arith.constant 0 : index
    %1 = vector.load %arg2[%c0_1, %c0_2] : memref<128x128xf32, #tpu.memory_space<vmem>>, vector<128x128xf32>
    %cst = arith.constant dense<0.000000e+00> : vector<64x128xf32>
    %2 = tpu.matmul %0, %1, %cst {dimension_numbers = #tpu.dot_dimension_numbers<[1], [0], [0], [1], [0, 0, 1, 1], [], []>} : vector<64x128xf32>, vector<128x128xf32>, vector<64x128xf32> -> vector<64x128xf32>
    %c0_3 = arith.constant 0 : index
    %c0_4 = arith.constant 0 : index
    %3 = vector.load %arg4[%c0_3, %c0_4] : memref<1x128xf32, #tpu.memory_space<vmem>>, vector<1x128xf32>
    %4 = vector.broadcast %3 : vector<1x128xf32> to vector<64x128xf32>
    %5 = arith.addf %2, %4 : vector<64x128xf32>
    %c0_5 = arith.constant 0 : index
    %c0_6 = arith.constant 0 : index
    %6 = vector.load %arg6[%c0_5, %c0_6] : memref<64x128xf32, #tpu.memory_space<vmem>>, vector<64x128xf32>
    tpu.vector_store %arg6[%c0_5, %c0_6], %5 {strides = array<i32>} : memref<64x128xf32, #tpu.memory_space<vmem>>, vector<64x128xf32>,
    %c0_7 = arith.constant 0 : index
    %c0_8 = arith.constant 0 : index
    %7 = vector.load %arg3[%c0_7, %c0_8] : memref<32x128xf32, #tpu.memory_space<vmem>>, vector<32x128xf32>
    %8 = tpu.iota {dimensions = array<i32: 1>} : vector<8x128xi32>
    %c64_i32 = arith.constant 64 : i32
    %9 = vector.broadcast %c64_i32 : i32 to vector<8x128xi32>
    %10 = arith.cmpi sge, %8, %9 : vector<8x128xi32>
    %c96_i32 = arith.constant 96 : i32
    %11 = vector.broadcast %c96_i32 : i32 to vector<8x128xi32>
    %12 = arith.cmpi slt, %8, %11 : vector<8x128xi32>
    %13 = arith.andi %10, %12 : vector<8x128xi1>
    %cst_9 = arith.constant 0.000000e+00 : f32
    %14 = vector.broadcast %cst_9 : f32 to vector<8x32xf32>
    %cst_10 = arith.constant 0.000000e+00 : f32
    %15 = vector.broadcast %cst_10 : f32 to vector<8x32xf32>
    %c0_11 = arith.constant 0 : index
    %c0_12 = arith.constant 0 : index
    %16 = vector.load %arg6[%c0_11, %c0_12] : memref<64x128xf32, #tpu.memory_space<vmem>>, vector<8x128xf32>
    %cst_13 = arith.constant dense<0.000000e+00> : vector<8x128xf32>
    %17 = tpu.matmul %14, %7, %cst_13 {dimension_numbers = #tpu.dot_dimension_numbers<[1], [0], [0], [1], [0, 0, 1, 1], [], []>} : vector<8x32xf32>, vector<32x128xf32>, vector<8x128xf32> -> vector<8x128xf32>
    %18 = arith.addf %16, %17 : vector<8x128xf32>
    %19 = math.tanh %18 : vector<8x128xf32>
    %20 = arith.negf %18 : vector<8x128xf32>
    %21 = math.exp %20 : vector<8x128xf32>
    %cst_14 = arith.constant 1.000000e+00 : f32
    %22 = vector.broadcast %cst_14 : f32 to vector<8x128xf32>
    %23 = arith.addf %22, %21 : vector<8x128xf32>
    %24 = arith.divf %22, %23 : vector<8x128xf32>
    %25 = arith.select %13, %19, %24 : vector<8x128xi1>, vector<8x128xf32>
    %26 = vector.extract_strided_slice %25 {offsets = [0, 0], sizes = [8, 32], strides = [1, 1]} : vector<8x128xf32> to vector<8x32xf32>
    %27 = vector.extract_strided_slice %25 {offsets = [0, 32], sizes = [8, 32], strides = [1, 1]} : vector<8x128xf32> to vector<8x32xf32>
    %28 = vector.extract_strided_slice %25 {offsets = [0, 64], sizes = [8, 32], strides = [1, 1]} : vector<8x128xf32> to vector<8x32xf32>
    %29 = vector.extract_strided_slice %25 {offsets = [0, 96], sizes = [8, 32], strides = [1, 1]} : vector<8x128xf32> to vector<8x32xf32>
    %30 = arith.mulf %27, %15 : vector<8x32xf32>
    %31 = arith.mulf %26, %28 : vector<8x32xf32>
    %32 = arith.addf %30, %31 : vector<8x32xf32>
    %33 = math.tanh %32 : vector<8x32xf32>
    %34 = arith.mulf %29, %33 : vector<8x32xf32>
    %c8 = arith.constant 8 : index
    %c0_15 = arith.constant 0 : index
    %35 = vector.load %arg6[%c8, %c0_15] : memref<64x128xf32, #tpu.memory_space<vmem>>, vector<8x128xf32>
    %cst_16 = arith.constant dense<0.000000e+00> : vector<8x128xf32>
    %36 = tpu.matmul %34, %7, %cst_16 {dimension_numbers = #tpu.dot_dimension_numbers<[1], [0], [0], [1], [0, 0, 1, 1], [], []>} : vector<8x32xf32>, vector<32x128xf32>, vector<8x128xf32> -> vector<8x128xf32>
    %37 = arith.addf %35, %36 : vector<8x128xf32>
    %38 = math.tanh %37 : vector<8x128xf32>
    %39 = arith.negf %37 : vector<8x128xf32>
    %40 = math.exp %39 : vector<8x128xf32>
    %cst_17 = arith.constant 1.000000e+00 : f32
    %41 = vector.broadcast %cst_17 : f32 to vector<8x128xf32>
    %42 = arith.addf %41, %40 : vector<8x128xf32>
    %43 = arith.divf %41, %42 : vector<8x128xf32>
    %44 = arith.select %13, %38, %43 : vector<8x128xi1>, vector<8x128xf32>
    %45 = vector.extract_strided_slice %44 {offsets = [0, 0], sizes = [8, 32], strides = [1, 1]} : vector<8x128xf32> to vector<8x32xf32>
    %46 = vector.extract_strided_slice %44 {offsets = [0, 32], sizes = [8, 32], strides = [1, 1]} : vector<8x128xf32> to vector<8x32xf32>
    %47 = vector.extract_strided_slice %44 {offsets = [0, 64], sizes = [8, 32], strides = [1, 1]} : vector<8x128xf32> to vector<8x32xf32>
    %48 = vector.extract_strided_slice %44 {offsets = [0, 96], sizes = [8, 32], strides = [1, 1]} : vector<8x128xf32> to vector<8x32xf32>
    %49 = arith.mulf %46, %32 : vector<8x32xf32>
    %50 = arith.mulf %45, %47 : vector<8x32xf32>
    %51 = arith.addf %49, %50 : vector<8x32xf32>
    %52 = math.tanh %51 : vector<8x32xf32>
    %53 = arith.mulf %48, %52 : vector<8x32xf32>
    %c16 = arith.constant 16 : index
    %c0_18 = arith.constant 0 : index
    %54 = vector.load %arg6[%c16, %c0_18] : memref<64x128xf32, #tpu.memory_space<vmem>>, vector<8x128xf32>
    %cst_19 = arith.constant dense<0.000000e+00> : vector<8x128xf32>
    %55 = tpu.matmul %53, %7, %cst_19 {dimension_numbers = #tpu.dot_dimension_numbers<[1], [0], [0], [1], [0, 0, 1, 1], [], []>} : vector<8x32xf32>, vector<32x128xf32>, vector<8x128xf32> -> vector<8x128xf32>
    %56 = arith.addf %54, %55 : vector<8x128xf32>
    %57 = math.tanh %56 : vector<8x128xf32>
    %58 = arith.negf %56 : vector<8x128xf32>
    %59 = math.exp %58 : vector<8x128xf32>
    %cst_20 = arith.constant 1.000000e+00 : f32
    %60 = vector.broadcast %cst_20 : f32 to vector<8x128xf32>
    %61 = arith.addf %60, %59 : vector<8x128xf32>
    %62 = arith.divf %60, %61 : vector<8x128xf32>
    %63 = arith.select %13, %57, %62 : vector<8x128xi1>, vector<8x128xf32>
    %64 = vector.extract_strided_slice %63 {offsets = [0, 0], sizes = [8, 32], strides = [1, 1]} : vector<8x128xf32> to vector<8x32xf32>
    %65 = vector.extract_strided_slice %63 {offsets = [0, 32], sizes = [8, 32], strides = [1, 1]} : vector<8x128xf32> to vector<8x32xf32>
    %66 = vector.extract_strided_slice %63 {offsets = [0, 64], sizes = [8, 32], strides = [1, 1]} : vector<8x128xf32> to vector<8x32xf32>
    %67 = vector.extract_strided_slice %63 {offsets = [0, 96], sizes = [8, 32], strides = [1, 1]} : vector<8x128xf32> to vector<8x32xf32>
    %68 = arith.mulf %65, %51 : vector<8x32xf32>
    %69 = arith.mulf %64, %66 : vector<8x32xf32>
    %70 = arith.addf %68, %69 : vector<8x32xf32>
    %71 = math.tanh %70 : vector<8x32xf32>
    %72 = arith.mulf %67, %71 : vector<8x32xf32>
    %c24 = arith.constant 24 : index
    %c0_21 = arith.constant 0 : index
    %73 = vector.load %arg6[%c24, %c0_21] : memref<64x128xf32, #tpu.memory_space<vmem>>, vector<8x128xf32>
    %cst_22 = arith.constant dense<0.000000e+00> : vector<8x128xf32>
    %74 = tpu.matmul %72, %7, %cst_22 {dimension_numbers = #tpu.dot_dimension_numbers<[1], [0], [0], [1], [0, 0, 1, 1], [], []>} : vector<8x32xf32>, vector<32x128xf32>, vector<8x128xf32> -> vector<8x128xf32>
    %75 = arith.addf %73, %74 : vector<8x128xf32>
    %76 = math.tanh %75 : vector<8x128xf32>
    %77 = arith.negf %75 : vector<8x128xf32>
    %78 = math.exp %77 : vector<8x128xf32>
    %cst_23 = arith.constant 1.000000e+00 : f32
    %79 = vector.broadcast %cst_23 : f32 to vector<8x128xf32>
    %80 = arith.addf %79, %78 : vector<8x128xf32>
    %81 = arith.divf %79, %80 : vector<8x128xf32>
    %82 = arith.select %13, %76, %81 : vector<8x128xi1>, vector<8x128xf32>
    %83 = vector.extract_strided_slice %82 {offsets = [0, 0], sizes = [8, 32], strides = [1, 1]} : vector<8x128xf32> to vector<8x32xf32>
    %84 = vector.extract_strided_slice %82 {offsets = [0, 32], sizes = [8, 32], strides = [1, 1]} : vector<8x128xf32> to vector<8x32xf32>
    %85 = vector.extract_strided_slice %82 {offsets = [0, 64], sizes = [8, 32], strides = [1, 1]} : vector<8x128xf32> to vector<8x32xf32>
    %86 = vector.extract_strided_slice %82 {offsets = [0, 96], sizes = [8, 32], strides = [1, 1]} : vector<8x128xf32> to vector<8x32xf32>
    %87 = arith.mulf %84, %70 : vector<8x32xf32>
    %88 = arith.mulf %83, %85 : vector<8x32xf32>
    %89 = arith.addf %87, %88 : vector<8x32xf32>
    %90 = math.tanh %89 : vector<8x32xf32>
    %91 = arith.mulf %86, %90 : vector<8x32xf32>
    %c32 = arith.constant 32 : index
    %c0_24 = arith.constant 0 : index
    %92 = vector.load %arg6[%c32, %c0_24] : memref<64x128xf32, #tpu.memory_space<vmem>>, vector<8x128xf32>
    %cst_25 = arith.constant dense<0.000000e+00> : vector<8x128xf32>
    %93 = tpu.matmul %91, %7, %cst_25 {dimension_numbers = #tpu.dot_dimension_numbers<[1], [0], [0], [1], [0, 0, 1, 1], [], []>} : vector<8x32xf32>, vector<32x128xf32>, vector<8x128xf32> -> vector<8x128xf32>
    %94 = arith.addf %92, %93 : vector<8x128xf32>
    %95 = math.tanh %94 : vector<8x128xf32>
    %96 = arith.negf %94 : vector<8x128xf32>
    %97 = math.exp %96 : vector<8x128xf32>
    %cst_26 = arith.constant 1.000000e+00 : f32
    %98 = vector.broadcast %cst_26 : f32 to vector<8x128xf32>
    %99 = arith.addf %98, %97 : vector<8x128xf32>
    %100 = arith.divf %98, %99 : vector<8x128xf32>
    %101 = arith.select %13, %95, %100 : vector<8x128xi1>, vector<8x128xf32>
    %102 = vector.extract_strided_slice %101 {offsets = [0, 0], sizes = [8, 32], strides = [1, 1]} : vector<8x128xf32> to vector<8x32xf32>
    %103 = vector.extract_strided_slice %101 {offsets = [0, 32], sizes = [8, 32], strides = [1, 1]} : vector<8x128xf32> to vector<8x32xf32>
    %104 = vector.extract_strided_slice %101 {offsets = [0, 64], sizes = [8, 32], strides = [1, 1]} : vector<8x128xf32> to vector<8x32xf32>
    %105 = vector.extract_strided_slice %101 {offsets = [0, 96], sizes = [8, 32], strides = [1, 1]} : vector<8x128xf32> to vector<8x32xf32>
    %106 = arith.mulf %103, %89 : vector<8x32xf32>
    %107 = arith.mulf %102, %104 : vector<8x32xf32>
    %108 = arith.addf %106, %107 : vector<8x32xf32>
    %109 = math.tanh %108 : vector<8x32xf32>
    %110 = arith.mulf %105, %109 : vector<8x32xf32>
    %c40 = arith.constant 40 : index
    %c0_27 = arith.constant 0 : index
    %111 = vector.load %arg6[%c40, %c0_27] : memref<64x128xf32, #tpu.memory_space<vmem>>, vector<8x128xf32>
    %cst_28 = arith.constant dense<0.000000e+00> : vector<8x128xf32>
    %112 = tpu.matmul %110, %7, %cst_28 {dimension_numbers = #tpu.dot_dimension_numbers<[1], [0], [0], [1], [0, 0, 1, 1], [], []>} : vector<8x32xf32>, vector<32x128xf32>, vector<8x128xf32> -> vector<8x128xf32>
    %113 = arith.addf %111, %112 : vector<8x128xf32>
    %114 = math.tanh %113 : vector<8x128xf32>
    %115 = arith.negf %113 : vector<8x128xf32>
    %116 = math.exp %115 : vector<8x128xf32>
    %cst_29 = arith.constant 1.000000e+00 : f32
    %117 = vector.broadcast %cst_29 : f32 to vector<8x128xf32>
    %118 = arith.addf %117, %116 : vector<8x128xf32>
    %119 = arith.divf %117, %118 : vector<8x128xf32>
    %120 = arith.select %13, %114, %119 : vector<8x128xi1>, vector<8x128xf32>
    %121 = vector.extract_strided_slice %120 {offsets = [0, 0], sizes = [8, 32], strides = [1, 1]} : vector<8x128xf32> to vector<8x32xf32>
    %122 = vector.extract_strided_slice %120 {offsets = [0, 32], sizes = [8, 32], strides = [1, 1]} : vector<8x128xf32> to vector<8x32xf32>
    %123 = vector.extract_strided_slice %120 {offsets = [0, 64], sizes = [8, 32], strides = [1, 1]} : vector<8x128xf32> to vector<8x32xf32>
    %124 = vector.extract_strided_slice %120 {offsets = [0, 96], sizes = [8, 32], strides = [1, 1]} : vector<8x128xf32> to vector<8x32xf32>
    %125 = arith.mulf %122, %108 : vector<8x32xf32>
    %126 = arith.mulf %121, %123 : vector<8x32xf32>
    %127 = arith.addf %125, %126 : vector<8x32xf32>
    %128 = math.tanh %127 : vector<8x32xf32>
    %129 = arith.mulf %124, %128 : vector<8x32xf32>
    %c48 = arith.constant 48 : index
    %c0_30 = arith.constant 0 : index
    %130 = vector.load %arg6[%c48, %c0_30] : memref<64x128xf32, #tpu.memory_space<vmem>>, vector<8x128xf32>
    %cst_31 = arith.constant dense<0.000000e+00> : vector<8x128xf32>
    %131 = tpu.matmul %129, %7, %cst_31 {dimension_numbers = #tpu.dot_dimension_numbers<[1], [0], [0], [1], [0, 0, 1, 1], [], []>} : vector<8x32xf32>, vector<32x128xf32>, vector<8x128xf32> -> vector<8x128xf32>
    %132 = arith.addf %130, %131 : vector<8x128xf32>
    %133 = math.tanh %132 : vector<8x128xf32>
    %134 = arith.negf %132 : vector<8x128xf32>
    %135 = math.exp %134 : vector<8x128xf32>
    %cst_32 = arith.constant 1.000000e+00 : f32
    %136 = vector.broadcast %cst_32 : f32 to vector<8x128xf32>
    %137 = arith.addf %136, %135 : vector<8x128xf32>
    %138 = arith.divf %136, %137 : vector<8x128xf32>
    %139 = arith.select %13, %133, %138 : vector<8x128xi1>, vector<8x128xf32>
    %140 = vector.extract_strided_slice %139 {offsets = [0, 0], sizes = [8, 32], strides = [1, 1]} : vector<8x128xf32> to vector<8x32xf32>
    %141 = vector.extract_strided_slice %139 {offsets = [0, 32], sizes = [8, 32], strides = [1, 1]} : vector<8x128xf32> to vector<8x32xf32>
    %142 = vector.extract_strided_slice %139 {offsets = [0, 64], sizes = [8, 32], strides = [1, 1]} : vector<8x128xf32> to vector<8x32xf32>
    %143 = vector.extract_strided_slice %139 {offsets = [0, 96], sizes = [8, 32], strides = [1, 1]} : vector<8x128xf32> to vector<8x32xf32>
    %144 = arith.mulf %141, %127 : vector<8x32xf32>
    %145 = arith.mulf %140, %142 : vector<8x32xf32>
    %146 = arith.addf %144, %145 : vector<8x32xf32>
    %147 = math.tanh %146 : vector<8x32xf32>
    %148 = arith.mulf %143, %147 : vector<8x32xf32>
    %c56 = arith.constant 56 : index
    %c0_33 = arith.constant 0 : index
    %149 = vector.load %arg6[%c56, %c0_33] : memref<64x128xf32, #tpu.memory_space<vmem>>, vector<8x128xf32>
    %cst_34 = arith.constant dense<0.000000e+00> : vector<8x128xf32>
    %150 = tpu.matmul %148, %7, %cst_34 {dimension_numbers = #tpu.dot_dimension_numbers<[1], [0], [0], [1], [0, 0, 1, 1], [], []>} : vector<8x32xf32>, vector<32x128xf32>, vector<8x128xf32> -> vector<8x128xf32>
    %151 = arith.addf %149, %150 : vector<8x128xf32>
    %152 = math.tanh %151 : vector<8x128xf32>
    %153 = arith.negf %151 : vector<8x128xf32>
    %154 = math.exp %153 : vector<8x128xf32>
    %cst_35 = arith.constant 1.000000e+00 : f32
    %155 = vector.broadcast %cst_35 : f32 to vector<8x128xf32>
    %156 = arith.addf %155, %154 : vector<8x128xf32>
    %157 = arith.divf %155, %156 : vector<8x128xf32>
    %158 = arith.select %13, %152, %157 : vector<8x128xi1>, vector<8x128xf32>
    %159 = vector.extract_strided_slice %158 {offsets = [0, 0], sizes = [8, 32], strides = [1, 1]} : vector<8x128xf32> to vector<8x32xf32>
    %160 = vector.extract_strided_slice %158 {offsets = [0, 32], sizes = [8, 32], strides = [1, 1]} : vector<8x128xf32> to vector<8x32xf32>
    %161 = vector.extract_strided_slice %158 {offsets = [0, 64], sizes = [8, 32], strides = [1, 1]} : vector<8x128xf32> to vector<8x32xf32>
    %162 = vector.extract_strided_slice %158 {offsets = [0, 96], sizes = [8, 32], strides = [1, 1]} : vector<8x128xf32> to vector<8x32xf32>
    %163 = arith.mulf %160, %146 : vector<8x32xf32>
    %164 = arith.mulf %159, %161 : vector<8x32xf32>
    %165 = arith.addf %163, %164 : vector<8x32xf32>
    %166 = math.tanh %165 : vector<8x32xf32>
    %167 = arith.mulf %162, %166 : vector<8x32xf32>
    %c0_36 = arith.constant 0 : index
    %c0_37 = arith.constant 0 : index
    %168 = vector.load %arg5[%c0_36, %c0_37] : memref<8x32xf32, #tpu.memory_space<vmem>>, vector<8x32xf32>
    tpu.vector_store %arg5[%c0_36, %c0_37], %167 {strides = array<i32>} : memref<8x32xf32, #tpu.memory_space<vmem>>, vector<8x32xf32>,
    return
  }
  func.func @transform_0(%arg0: i32) -> (i32, i32) {
    %c0_i32 = arith.constant 0 : i32
    %c0_i32_0 = arith.constant 0 : i32
    %c0_i32_1 = arith.constant 0 : i32
    return %c0_i32, %c0_i32_0 : i32, i32
  }
  func.func @transform_1(%arg0: i32) -> (i32, i32) {
    %c0_i32 = arith.constant 0 : i32
    %c0_i32_0 = arith.constant 0 : i32
    %c0_i32_1 = arith.constant 0 : i32
    return %c0_i32, %c0_i32_0 : i32, i32
  }
  func.func @transform_2(%arg0: i32) -> (i32, i32) {
    %c0_i32 = arith.constant 0 : i32
    %c0_i32_0 = arith.constant 0 : i32
    %c0_i32_1 = arith.constant 0 : i32
    return %c0_i32, %c0_i32_0 : i32, i32
  }
  func.func @transform_3(%arg0: i32) -> (i32, i32) {
    %c0_i32 = arith.constant 0 : i32
    %c0_i32_0 = arith.constant 0 : i32
    %c0_i32_1 = arith.constant 0 : i32
    return %c0_i32, %c0_i32_0 : i32, i32
  }
  func.func @transform_4(%arg0: i32) -> (i32, i32) {
    %c0_i32 = arith.constant 0 : i32
    %c0_i32_0 = arith.constant 0 : i32
    %c0_i32_1 = arith.constant 0 : i32
    return %c0_i32, %c0_i32_0 : i32, i32
  }
}

</mosaic_0001>

<llo_original>
// kernel: lstm_regressor_forward.1
$region0: #{lstm_regressor_forward.1}
  #allocation0 [shape = 'u32[]', space=smem, size = 0x4, offset = 0x4, fixed_abs, tag = 'smem constant byte address 0x4 - core index']
  #allocation1 [shape = 'u32[144,128]{1,0:T(1,128)}', space=vmem, size = 0x12000, scoped, tag = 'internal scratch']
  #allocation2 [shape = 'f32[64,128]{1,0:T(8,128)}', space=vmem, size = 0x8000, scoped, tag = 'scratch operand']
  %s0 = inlined_call_operand.vmem [shape: f32[64,128], index: 0, kind: input, shape index: {}]
  %s1 = inlined_call_operand.vmem [shape: f32[128,128], index: 1, kind: input, shape index: {}]
  %s2 = inlined_call_operand.vmem [shape: f32[32,128], index: 2, kind: input, shape index: {}]
  %s3 = inlined_call_operand.vmem [shape: f32[1,128], index: 3, kind: input, shape index: {}]
  %s4 = inlined_call_operand.vmem [shape: f32[8,32], index: 4, kind: output, shape index: {}]
  %s5 = sld [smem:[#allocation0]]
  $region26: #{lstm_regressor_forward.1} parent=0
    _
  %s7 = ssub.s32 1, %s5
  %s8 = scalar_select 0, %s7, %s5
  // Predicated region
  $region2: #{lstm_regressor_forward.1} parent=0 // pred_check
    _
  $region3: #{lstm_regressor_forward.1} parent=0 // pred_check_branch
    %10 = sbr.rel (0) target = $region5
  $region4: #{lstm_regressor_forward.1} parent=0 // pred_region
    _
  $region5: #{lstm_regressor_forward.1} parent=0 // pred_fallthru
    _
  // Predicated region
  $region6: #{lstm_regressor_forward.1} parent=0 // pred_check
    _
  $region7: #{lstm_regressor_forward.1} parent=0 // pred_check_branch
    %12 = sbr.rel (0) target = $region9
  $region8: #{lstm_regressor_forward.1} parent=0 // pred_region
    _
  $region9: #{lstm_regressor_forward.1} parent=0 // pred_fallthru
    _
  // Predicated region
  $region10: #{lstm_regressor_forward.1} parent=0 // pred_check
    _
  $region11: #{lstm_regressor_forward.1} parent=0 // pred_check_branch
    %14 = sbr.rel (0) target = $region13
  $region12: #{lstm_regressor_forward.1} parent=0 // pred_region
    _
  $region13: #{lstm_regressor_forward.1} parent=0 // pred_fallthru
    _
  // Predicated region
  $region14: #{lstm_regressor_forward.1} parent=0 // pred_check
    _
  $region15: #{lstm_regressor_forward.1} parent=0 // pred_check_branch
    %16 = sbr.rel (0) target = $region17
  $region16: #{lstm_regressor_forward.1} parent=0 // pred_region
    _
  $region17: #{lstm_regressor_forward.1} parent=0 // pred_fallthru
    _
  %v17 = vld [vmem:[%s0] sm:$0xff]
  %v18 = vld [vmem:[%s0 + $0x8] sm:$0xff]
  %v19 = vld [vmem:[%s0 + $0x10] sm:$0xff]
  %v20 = vld [vmem:[%s0 + $0x18] sm:$0xff]
  %v21 = vld [vmem:[%s0 + $0x20] sm:$0xff]
  %v22 = vld [vmem:[%s0 + $0x28] sm:$0xff]
  %v23 = vld [vmem:[%s0 + $0x30] sm:$0xff]
  %v24 = vld [vmem:[%s0 + $0x38] sm:$0xff]
  %v25 = vld [vmem:[%s1] sm:$0xff]
  %v26 = vld [vmem:[%s1 + $0x8] sm:$0xff]
  %v27 = vld [vmem:[%s1 + $0x10] sm:$0xff]
  %v28 = vld [vmem:[%s1 + $0x18] sm:$0xff]
  %v29 = vld [vmem:[%s1 + $0x20] sm:$0xff]
  %v30 = vld [vmem:[%s1 + $0x28] sm:$0xff]
  %v31 = vld [vmem:[%s1 + $0x30] sm:$0xff]
  %v32 = vld [vmem:[%s1 + $0x38] sm:$0xff]
  %v33 = vld [vmem:[%s1 + $0x40] sm:$0xff]
  %v34 = vld [vmem:[%s1 + $0x48] sm:$0xff]
  %v35 = vld [vmem:[%s1 + $0x50] sm:$0xff]
  %v36 = vld [vmem:[%s1 + $0x58] sm:$0xff]
  %v37 = vld [vmem:[%s1 + $0x60] sm:$0xff]
  %v38 = vld [vmem:[%s1 + $0x68] sm:$0xff]
  %v39 = vld [vmem:[%s1 + $0x70] sm:$0xff]
  %v40 = vld [vmem:[%s1 + $0x78] sm:$0xff]
  %v41 = vld [vmem:[%s3] sm:$0x1]
  %v43 = vlaneseq
  %v44 = vshrl.u32 %v43, 7
  %v45 = vsub.s32 0, %v44
  %v46 = vrot.slane %v41, %v45
  %48 = vmatprep.subr.mxu0 0.0
  %49 = vmatpush1.msra.mxu0 %v25
  %50 = vmatprep.subr.mxu0 0.0
  %51 = vmatpush1.msra.mxu0 %v26
  %52 = vmatprep.subr.mxu0 0.0
  %53 = vmatpush1.msra.mxu0 %v27
  %54 = vmatprep.subr.mxu0 0.0
  %55 = vmatpush1.msra.mxu0 %v28
  %56 = vmatprep.subr.mxu0 0.0
  %57 = vmatpush1.msra.mxu0 %v29
  %58 = vmatprep.subr.mxu0 0.0
  %59 = vmatpush1.msra.mxu0 %v30
  %60 = vmatprep.subr.mxu0 0.0
  %61 = vmatpush1.msra.mxu0 %v31
  %62 = vmatprep.subr.mxu0 0.0
  %63 = vmatpush1.msra.mxu0 %v32
  %64 = vmatprep.subr.mxu0 0.0
  %65 = vmatpush1.msra.mxu0 %v33
  %66 = vmatprep.subr.mxu0 0.0
  %67 = vmatpush1.msra.mxu0 %v34
  %68 = vmatprep.subr.mxu0 0.0
  %69 = vmatpush1.msra.mxu0 %v35
  %70 = vmatprep.subr.mxu0 0.0
  %71 = vmatpush1.msra.mxu0 %v36
  %72 = vmatprep.subr.mxu0 0.0
  %73 = vmatpush1.msra.mxu0 %v37
  %74 = vmatprep.subr.mxu0 0.0
  %75 = vmatpush1.msra.mxu0 %v38
  %76 = vmatprep.subr.mxu0 0.0
  %77 = vmatpush1.msra.mxu0 %v39
  %78 = vmatprep.subr.mxu0 0.0
  %79 = vmatpush1.msra.mxu0 %v40
  %80 = vmatprep.subr.mxu0 0.0
  %81 = vmatpush1.msra.mxu0 0.0
  %82 = vmatprep.subr.mxu0 0.0
  %83 = vmatpush1.msra.mxu0 0.0
  %84 = vmatprep.subr.mxu0 0.0
  %85 = vmatpush1.msra.mxu0 0.0
  %86 = vmatprep.subr.mxu0 0.0
  %87 = vmatpush1.msra.mxu0 0.0
  %88 = vmatprep.subr.mxu0 0.0
  %89 = vmatpush1.msra.mxu0 0.0
  %90 = vmatprep.subr.mxu0 0.0
  %91 = vmatpush1.msra.mxu0 0.0
  %92 = vmatprep.subr.mxu0 0.0
  %93 = vmatpush1.msra.mxu0 0.0
  %94 = vmatprep.subr.mxu0 0.0
  %95 = vmatpush1.msra.mxu0 0.0
  %96 = vmatprep.subr.mxu0 0.0
  %97 = vmatpush1.msra.mxu0 0.0
  %98 = vmatprep.subr.mxu0 0.0
  %99 = vmatpush1.msra.mxu0 0.0
  %100 = vmatprep.subr.mxu0 0.0
  %101 = vmatpush1.msra.mxu0 0.0
  %102 = vmatprep.subr.mxu0 0.0
  %103 = vmatpush1.msra.mxu0 0.0
  %104 = vmatprep.subr.mxu0 0.0
  %105 = vmatpush1.msra.mxu0 0.0
  %106 = vmatprep.subr.mxu0 0.0
  %107 = vmatpush1.msra.mxu0 0.0
  %108 = vmatprep.subr.mxu0 0.0
  %109 = vmatpush1.msra.mxu0 0.0
  %110 = vmatprep.subr.mxu0 0.0
  %111 = vmatpush1.msra.mxu0 0.0
  %112 = vmatprep.mubr.f32.mxu0 0.0
  %113 = vmatmul.mubr.f32.gmra.mrb[0].mxu0 %v17
  %v114 = vpop.f32.mrb[0].mxu0
  %v115 = vadd.f32 %v46, %v114
  %v116 = vpop.f32.mrb[0].mxu0
  %117 = vmatprep.mubr.f32.mxu0 0.0
  %118 = vmatmul.mubr.f32.gmra.mrb[0].mxu0 %v18
  %v119 = vpop.f32.mrb[0].mxu0
  %v120 = vadd.f32 %v46, %v119
  %v121 = vpop.f32.mrb[0].mxu0
  %122 = vmatprep.mubr.f32.mxu0 0.0
  %123 = vmatmul.mubr.f32.gmra.mrb[0].mxu0 %v19
  %v124 = vpop.f32.mrb[0].mxu0
  %v125 = vadd.f32 %v46, %v124
  %v126 = vpop.f32.mrb[0].mxu0
  %127 = vmatprep.mubr.f32.mxu0 0.0
  %128 = vmatmul.mubr.f32.gmra.mrb[0].mxu0 %v20
  %v129 = vpop.f32.mrb[0].mxu0
  %v130 = vadd.f32 %v46, %v129
  %v131 = vpop.f32.mrb[0].mxu0
  %132 = vmatprep.mubr.f32.mxu0 0.0
  %133 = vmatmul.mubr.f32.gmra.mrb[0].mxu0 %v21
  %v134 = vpop.f32.mrb[0].mxu0
  %v135 = vadd.f32 %v46, %v134
  %v136 = vpop.f32.mrb[0].mxu0
  %137 = vmatprep.mubr.f32.mxu0 0.0
  %138 = vmatmul.mubr.f32.gmra.mrb[0].mxu0 %v22
  %v139 = vpop.f32.mrb[0].mxu0
  %v140 = vadd.f32 %v46, %v139
  %v141 = vpop.f32.mrb[0].mxu0
  %142 = vmatprep.mubr.f32.mxu0 0.0
  %143 = vmatmul.mubr.f32.gmra.mrb[0].mxu0 %v23
  %v144 = vpop.f32.mrb[0].mxu0
  %v145 = vadd.f32 %v46, %v144
  %v146 = vpop.f32.mrb[0].mxu0
  %147 = vmatprep.mubr.f32.mxu0 0.0
  %148 = vmatmul.mubr.f32.gmra.mrb[0].mxu0 %v24
  %v149 = vpop.f32.mrb[0].mxu0
  %v150 = vadd.f32 %v46, %v149
  %v151 = vpop.f32.mrb[0].mxu0
  %152 = vdwg.mxu0
  %153 = vst [vmem:[#allocation2] sm:$0xff] %v115
  %154 = vst [vmem:[#allocation2 + $0x8] sm:$0xff] %v120
  %155 = vst [vmem:[#allocation2 + $0x10] sm:$0xff] %v125
  %156 = vst [vmem:[#allocation2 + $0x18] sm:$0xff] %v130
  %157 = vst [vmem:[#allocation2 + $0x20] sm:$0xff] %v135
  %158 = vst [vmem:[#allocation2 + $0x28] sm:$0xff] %v140
  %159 = vst [vmem:[#allocation2 + $0x30] sm:$0xff] %v145
  %160 = vst [vmem:[#allocation2 + $0x38] sm:$0xff] %v150
  %v161 = vld [vmem:[%s2] sm:$0xff]
  %v162 = vld [vmem:[%s2 + $0x8] sm:$0xff]
  %v163 = vld [vmem:[%s2 + $0x10] sm:$0xff]
  %v164 = vld [vmem:[%s2 + $0x18] sm:$0xff]
  %v165 = vlaneseq
  %v166 = vand.u32 %v165, 127
  %vm167 = vcmp.ge.s32.totalorder %v166, 64
  %vm168 = vcmp.lt.s32.totalorder %v166, 96
  %vm169 = vmand %vm167, %vm168
  %v170 = vld [vmem:[#allocation2] sm:$0xff]
  %vm171 = vcmask 261120
  %v173 = vsel %vm171, 0.0, 0
  %175 = vmatprep.subr.mxu0 0.0
  %176 = vmatpush1.msra.mxu0 %v161
  %177 = vmatprep.subr.mxu0 0.0
  %178 = vmatpush1.msra.mxu0 %v162
  %179 = vmatprep.subr.mxu0 0.0
  %180 = vmatpush1.msra.mxu0 %v163
  %181 = vmatprep.subr.mxu0 0.0
  %182 = vmatpush1.msra.mxu0 %v164
  %183 = vmatprep.subr.mxu0 0.0
  %184 = vmatpush1.msra.mxu0 0.0
  %185 = vmatprep.subr.mxu0 0.0
  %186 = vmatpush1.msra.mxu0 0.0
  %187 = vmatprep.subr.mxu0 0.0
  %188 = vmatpush1.msra.mxu0 0.0
  %189 = vmatprep.subr.mxu0 0.0
  %190 = vmatpush1.msra.mxu0 0.0
  %191 = vmatprep.subr.mxu0 0.0
  %192 = vmatpush1.msra.mxu0 0.0
  %193 = vmatprep.subr.mxu0 0.0
  %194 = vmatpush1.msra.mxu0 0.0
  %195 = vmatprep.subr.mxu0 0.0
  %196 = vmatpush1.msra.mxu0 0.0
  %197 = vmatprep.subr.mxu0 0.0
  %198 = vmatpush1.msra.mxu0 0.0
  %199 = vmatprep.subr.mxu0 0.0
  %200 = vmatpush1.msra.mxu0 0.0
  %201 = vmatprep.subr.mxu0 0.0
  %202 = vmatpush1.msra.mxu0 0.0
  %203 = vmatprep.subr.mxu0 0.0
  %204 = vmatpush1.msra.mxu0 0.0
  %205 = vmatprep.subr.mxu0 0.0
  %206 = vmatpush1.msra.mxu0 0.0
  %207 = vmatprep.subr.mxu0 0.0
  %208 = vmatpush1.msra.mxu0 0.0
  %209 = vmatprep.subr.mxu0 0.0
  %210 = vmatpush1.msra.mxu0 0.0
  %211 = vmatprep.subr.mxu0 0.0
  %212 = vmatpush1.msra.mxu0 0.0
  %213 = vmatprep.subr.mxu0 0.0
  %214 = vmatpush1.msra.mxu0 0.0
  %215 = vmatprep.subr.mxu0 0.0
  %216 = vmatpush1.msra.mxu0 0.0
  %217 = vmatprep.subr.mxu0 0.0
  %218 = vmatpush1.msra.mxu0 0.0
  %219 = vmatprep.subr.mxu0 0.0
  %220 = vmatpush1.msra.mxu0 0.0
  %221 = vmatprep.subr.mxu0 0.0
  %222 = vmatpush1.msra.mxu0 0.0
  %223 = vmatprep.subr.mxu0 0.0
  %224 = vmatpush1.msra.mxu0 0.0
  %225 = vmatprep.subr.mxu0 0.0
  %226 = vmatpush1.msra.mxu0 0.0
  %227 = vmatprep.subr.mxu0 0.0
  %228 = vmatpush1.msra.mxu0 0.0
  %229 = vmatprep.subr.mxu0 0.0
  %230 = vmatpush1.msra.mxu0 0.0
  %231 = vmatprep.subr.mxu0 0.0
  %232 = vmatpush1.msra.mxu0 0.0
  %233 = vmatprep.subr.mxu0 0.0
  %234 = vmatpush1.msra.mxu0 0.0
  %235 = vmatprep.subr.mxu0 0.0
  %236 = vmatpush1.msra.mxu0 0.0
  %237 = vmatprep.subr.mxu0 0.0
  %238 = vmatpush1.msra.mxu0 0.0
  %239 = vmatprep.mubr.f32.mxu0 0.0
  %240 = vmatmul.mubr.f32.gmra.mrb[0].mxu0 %v173
  %v241 = vpop.f32.mrb[0].mxu0
  %v242 = vadd.f32 0.0, %v241
  %v243 = vpop.f32.mrb[0].mxu0
  %244 = vdwg.mxu0
  %v245 = vadd.f32 %v170, %v242
  %v246 = vtanh.pop %v245
  %v247 = vxor.u32 %v245, 2147483648
  %v248 = vmul.f32 %v247, 1.442695
  %v249 = vpow.pop %v248
  %v250 = vadd.f32 %v249, 1.0
  %v251 = vrcp.pop %v250
  %v252 = vmul.f32 1.0, %v251
  %v253 = vsel %vm169, %v246, %v252
  %v254 = vmul.f32 %v253, 0.0
  %256 = vrot.lane.b32.xlu0 %v253, 64
  %v257 = vpop.permute.xlu0 %256
  %v259 = vmul.f32 %v253, %v257
  %261 = vrot.lane.b32.xlu0 %v259, 32
  %v262 = vpop.permute.xlu0 %261
  %v264 = vadd.f32 %v254, %v262
  %v265 = vtanh.pop %v264
  %267 = vrot.lane.b32.xlu0 %v265, 64
  %v268 = vpop.permute.xlu0 %267
  %v270 = vmul.f32 %v253, %v268
  %v271 = vld [vmem:[#allocation2 + $0x8] sm:$0xff]
  %273 = vrot.lane.b32.xlu0 %v270, 32
  %v274 = vpop.permute.xlu0 %273
  %v275 = vsel %vm171, %v274, 0
  %277 = vmatprep.subr.mxu0 0.0
  %278 = vmatpush1.msra.mxu0 %v161
  %279 = vmatprep.subr.mxu0 0.0
  %280 = vmatpush1.msra.mxu0 %v162
  %281 = vmatprep.subr.mxu0 0.0
  %282 = vmatpush1.msra.mxu0 %v163
  %283 = vmatprep.subr.mxu0 0.0
  %284 = vmatpush1.msra.mxu0 %v164
  %285 = vmatprep.subr.mxu0 0.0
  %286 = vmatpush1.msra.mxu0 0.0
  %287 = vmatprep.subr.mxu0 0.0
  %288 = vmatpush1.msra.mxu0 0.0
  %289 = vmatprep.subr.mxu0 0.0
  %290 = vmatpush1.msra.mxu0 0.0
  %291 = vmatprep.subr.mxu0 0.0
  %292 = vmatpush1.msra.mxu0 0.0
  %293 = vmatprep.subr.mxu0 0.0
  %294 = vmatpush1.msra.mxu0 0.0
  %295 = vmatprep.subr.mxu0 0.0
  %296 = vmatpush1.msra.mxu0 0.0
  %297 = vmatprep.subr.mxu0 0.0
  %298 = vmatpush1.msra.mxu0 0.0
  %299 = vmatprep.subr.mxu0 0.0
  %300 = vmatpush1.msra.mxu0 0.0
  %301 = vmatprep.subr.mxu0 0.0
  %302 = vmatpush1.msra.mxu0 0.0
  %303 = vmatprep.subr.mxu0 0.0
  %304 = vmatpush1.msra.mxu0 0.0
  %305 = vmatprep.subr.mxu0 0.0
  %306 = vmatpush1.msra.mxu0 0.0
  %307 = vmatprep.subr.mxu0 0.0
  %308 = vmatpush1.msra.mxu0 0.0
  %309 = vmatprep.subr.mxu0 0.0
  %310 = vmatpush1.msra.mxu0 0.0
  %311 = vmatprep.subr.mxu0 0.0
  %312 = vmatpush1.msra.mxu0 0.0
  %313 = vmatprep.subr.mxu0 0.0
  %314 = vmatpush1.msra.mxu0 0.0
  %315 = vmatprep.subr.mxu0 0.0
  %316 = vmatpush1.msra.mxu0 0.0
  %317 = vmatprep.subr.mxu0 0.0
  %318 = vmatpush1.msra.mxu0 0.0
  %319 = vmatprep.subr.mxu0 0.0
  %320 = vmatpush1.msra.mxu0 0.0
  %321 = vmatprep.subr.mxu0 0.0
  %322 = vmatpush1.msra.mxu0 0.0
  %323 = vmatprep.subr.mxu0 0.0
  %324 = vmatpush1.msra.mxu0 0.0
  %325 = vmatprep.subr.mxu0 0.0
  %326 = vmatpush1.msra.mxu0 0.0
  %327 = vmatprep.subr.mxu0 0.0
  %328 = vmatpush1.msra.mxu0 0.0
  %329 = vmatprep.subr.mxu0 0.0
  %330 = vmatpush1.msra.mxu0 0.0
  %331 = vmatprep.subr.mxu0 0.0
  %332 = vmatpush1.msra.mxu0 0.0
  %333 = vmatprep.subr.mxu0 0.0
  %334 = vmatpush1.msra.mxu0 0.0
  %335 = vmatprep.subr.mxu0 0.0
  %336 = vmatpush1.msra.mxu0 0.0
  %337 = vmatprep.subr.mxu0 0.0
  %338 = vmatpush1.msra.mxu0 0.0
  %339 = vmatprep.subr.mxu0 0.0
  %340 = vmatpush1.msra.mxu0 0.0
  %341 = vmatprep.mubr.f32.mxu0 0.0
  %342 = vmatmul.mubr.f32.gmra.mrb[0].mxu0 %v275
  %v343 = vpop.f32.mrb[0].mxu0
  %v344 = vadd.f32 0.0, %v343
  %v345 = vpop.f32.mrb[0].mxu0
  %346 = vdwg.mxu0
  %v347 = vadd.f32 %v271, %v344
  %v348 = vtanh.pop %v347
  %v349 = vxor.u32 %v347, 2147483648
  %v350 = vmul.f32 %v349, 1.442695
  %v351 = vpow.pop %v350
  %v352 = vadd.f32 %v351, 1.0
  %v353 = vrcp.pop %v352
  %v354 = vmul.f32 1.0, %v353
  %v355 = vsel %vm169, %v348, %v354
  %v356 = vmul.f32 %v355, %v264
  %358 = vrot.lane.b32.xlu0 %v355, 64
  %v359 = vpop.permute.xlu0 %358
  %v361 = vmul.f32 %v355, %v359
  %363 = vrot.lane.b32.xlu0 %v361, 32
  %v364 = vpop.permute.xlu0 %363
  %v366 = vadd.f32 %v356, %v364
  %v367 = vtanh.pop %v366
  %369 = vrot.lane.b32.xlu0 %v367, 64
  %v370 = vpop.permute.xlu0 %369
  %v372 = vmul.f32 %v355, %v370
  %v373 = vld [vmem:[#allocation2 + $0x10] sm:$0xff]
  %375 = vrot.lane.b32.xlu0 %v372, 32
  %v376 = vpop.permute.xlu0 %375
  %v377 = vsel %vm171, %v376, 0
  %379 = vmatprep.subr.mxu0 0.0
  %380 = vmatpush1.msra.mxu0 %v161
  %381 = vmatprep.subr.mxu0 0.0
  %382 = vmatpush1.msra.mxu0 %v162
  %383 = vmatprep.subr.mxu0 0.0
  %384 = vmatpush1.msra.mxu0 %v163
  %385 = vmatprep.subr.mxu0 0.0
  %386 = vmatpush1.msra.mxu0 %v164
  %387 = vmatprep.subr.mxu0 0.0
  %388 = vmatpush1.msra.mxu0 0.0
  %389 = vmatprep.subr.mxu0 0.0
  %390 = vmatpush1.msra.mxu0 0.0
  %391 = vmatprep.subr.mxu0 0.0
  %392 = vmatpush1.msra.mxu0 0.0
  %393 = vmatprep.subr.mxu0 0.0
  %394 = vmatpush1.msra.mxu0 0.0
  %395 = vmatprep.subr.mxu0 0.0
  %396 = vmatpush1.msra.mxu0 0.0
  %397 = vmatprep.subr.mxu0 0.0
  %398 = vmatpush1.msra.mxu0 0.0
  %399 = vmatprep.subr.mxu0 0.0
  %400 = vmatpush1.msra.mxu0 0.0
  %401 = vmatprep.subr.mxu0 0.0
  %402 = vmatpush1.msra.mxu0 0.0
  %403 = vmatprep.subr.mxu0 0.0
  %404 = vmatpush1.msra.mxu0 0.0
  %405 = vmatprep.subr.mxu0 0.0
  %406 = vmatpush1.msra.mxu0 0.0
  %407 = vmatprep.subr.mxu0 0.0
  %408 = vmatpush1.msra.mxu0 0.0
  %409 = vmatprep.subr.mxu0 0.0
  %410 = vmatpush1.msra.mxu0 0.0
  %411 = vmatprep.subr.mxu0 0.0
  %412 = vmatpush1.msra.mxu0 0.0
  %413 = vmatprep.subr.mxu0 0.0
  %414 = vmatpush1.msra.mxu0 0.0
  %415 = vmatprep.subr.mxu0 0.0
  %416 = vmatpush1.msra.mxu0 0.0
  %417 = vmatprep.subr.mxu0 0.0
  %418 = vmatpush1.msra.mxu0 0.0
  %419 = vmatprep.subr.mxu0 0.0
  %420 = vmatpush1.msra.mxu0 0.0
  %421 = vmatprep.subr.mxu0 0.0
  %422 = vmatpush1.msra.mxu0 0.0
  %423 = vmatprep.subr.mxu0 0.0
  %424 = vmatpush1.msra.mxu0 0.0
  %425 = vmatprep.subr.mxu0 0.0
  %426 = vmatpush1.msra.mxu0 0.0
  %427 = vmatprep.subr.mxu0 0.0
  %428 = vmatpush1.msra.mxu0 0.0
  %429 = vmatprep.subr.mxu0 0.0
  %430 = vmatpush1.msra.mxu0 0.0
  %431 = vmatprep.subr.mxu0 0.0
  %432 = vmatpush1.msra.mxu0 0.0
  %433 = vmatprep.subr.mxu0 0.0
  %434 = vmatpush1.msra.mxu0 0.0
  %435 = vmatprep.subr.mxu0 0.0
  %436 = vmatpush1.msra.mxu0 0.0
  %437 = vmatprep.subr.mxu0 0.0
  %438 = vmatpush1.msra.mxu0 0.0
  %439 = vmatprep.subr.mxu0 0.0
  %440 = vmatpush1.msra.mxu0 0.0
  %441 = vmatprep.subr.mxu0 0.0
  %442 = vmatpush1.msra.mxu0 0.0
  %443 = vmatprep.mubr.f32.mxu0 0.0
  %444 = vmatmul.mubr.f32.gmra.mrb[0].mxu0 %v377
  %v445 = vpop.f32.mrb[0].mxu0
  %v446 = vadd.f32 0.0, %v445
  %v447 = vpop.f32.mrb[0].mxu0
  %448 = vdwg.mxu0
  %v449 = vadd.f32 %v373, %v446
  %v450 = vtanh.pop %v449
  %v451 = vxor.u32 %v449, 2147483648
  %v452 = vmul.f32 %v451, 1.442695
  %v453 = vpow.pop %v452
  %v454 = vadd.f32 %v453, 1.0
  %v455 = vrcp.pop %v454
  %v456 = vmul.f32 1.0, %v455
  %v457 = vsel %vm169, %v450, %v456
  %v458 = vmul.f32 %v457, %v366
  %460 = vrot.lane.b32.xlu0 %v457, 64
  %v461 = vpop.permute.xlu0 %460
  %v463 = vmul.f32 %v457, %v461
  %465 = vrot.lane.b32.xlu0 %v463, 32
  %v466 = vpop.permute.xlu0 %465
  %v468 = vadd.f32 %v458, %v466
  %v469 = vtanh.pop %v468
  %471 = vrot.lane.b32.xlu0 %v469, 64
  %v472 = vpop.permute.xlu0 %471
  %v474 = vmul.f32 %v457, %v472
  %v475 = vld [vmem:[#allocation2 + $0x18] sm:$0xff]
  %477 = vrot.lane.b32.xlu0 %v474, 32
  %v478 = vpop.permute.xlu0 %477
  %v479 = vsel %vm171, %v478, 0
  %481 = vmatprep.subr.mxu0 0.0
  %482 = vmatpush1.msra.mxu0 %v161
  %483 = vmatprep.subr.mxu0 0.0
  %484 = vmatpush1.msra.mxu0 %v162
  %485 = vmatprep.subr.mxu0 0.0
  %486 = vmatpush1.msra.mxu0 %v163
  %487 = vmatprep.subr.mxu0 0.0
  %488 = vmatpush1.msra.mxu0 %v164
  %489 = vmatprep.subr.mxu0 0.0
  %490 = vmatpush1.msra.mxu0 0.0
  %491 = vmatprep.subr.mxu0 0.0
  %492 = vmatpush1.msra.mxu0 0.0
  %493 = vmatprep.subr.mxu0 0.0
  %494 = vmatpush1.msra.mxu0 0.0
  %495 = vmatprep.subr.mxu0 0.0
  %496 = vmatpush1.msra.mxu0 0.0
  %497 = vmatprep.subr.mxu0 0.0
  %498 = vmatpush1.msra.mxu0 0.0
  %499 = vmatprep.subr.mxu0 0.0
  %500 = vmatpush1.msra.mxu0 0.0
  %501 = vmatprep.subr.mxu0 0.0
  %502 = vmatpush1.msra.mxu0 0.0
  %503 = vmatprep.subr.mxu0 0.0
  %504 = vmatpush1.msra.mxu0 0.0
  %505 = vmatprep.subr.mxu0 0.0
  %506 = vmatpush1.msra.mxu0 0.0
  %507 = vmatprep.subr.mxu0 0.0
  %508 = vmatpush1.msra.mxu0 0.0
  %509 = vmatprep.subr.mxu0 0.0
  %510 = vmatpush1.msra.mxu0 0.0
  %511 = vmatprep.subr.mxu0 0.0
  %512 = vmatpush1.msra.mxu0 0.0
  %513 = vmatprep.subr.mxu0 0.0
  %514 = vmatpush1.msra.mxu0 0.0
  %515 = vmatprep.subr.mxu0 0.0
  %516 = vmatpush1.msra.mxu0 0.0
  %517 = vmatprep.subr.mxu0 0.0
  %518 = vmatpush1.msra.mxu0 0.0
  %519 = vmatprep.subr.mxu0 0.0
  %520 = vmatpush1.msra.mxu0 0.0
  %521 = vmatprep.subr.mxu0 0.0
  %522 = vmatpush1.msra.mxu0 0.0
  %523 = vmatprep.subr.mxu0 0.0
  %524 = vmatpush1.msra.mxu0 0.0
  %525 = vmatprep.subr.mxu0 0.0
  %526 = vmatpush1.msra.mxu0 0.0
  %527 = vmatprep.subr.mxu0 0.0
  %528 = vmatpush1.msra.mxu0 0.0
  %529 = vmatprep.subr.mxu0 0.0
  %530 = vmatpush1.msra.mxu0 0.0
  %531 = vmatprep.subr.mxu0 0.0
  %532 = vmatpush1.msra.mxu0 0.0
  %533 = vmatprep.subr.mxu0 0.0
  %534 = vmatpush1.msra.mxu0 0.0
  %535 = vmatprep.subr.mxu0 0.0
  %536 = vmatpush1.msra.mxu0 0.0
  %537 = vmatprep.subr.mxu0 0.0
  %538 = vmatpush1.msra.mxu0 0.0
  %539 = vmatprep.subr.mxu0 0.0
  %540 = vmatpush1.msra.mxu0 0.0
  %541 = vmatprep.subr.mxu0 0.0
  %542 = vmatpush1.msra.mxu0 0.0
  %543 = vmatprep.subr.mxu0 0.0
  %544 = vmatpush1.msra.mxu0 0.0
  %545 = vmatprep.mubr.f32.mxu0 0.0
  %546 = vmatmul.mubr.f32.gmra.mrb[0].mxu0 %v479
  %v547 = vpop.f32.mrb[0].mxu0
  %v548 = vadd.f32 0.0, %v547
  %v549 = vpop.f32.mrb[0].mxu0
  %550 = vdwg.mxu0
  %v551 = vadd.f32 %v475, %v548
  %v552 = vtanh.pop %v551
  %v553 = vxor.u32 %v551, 2147483648
  %v554 = vmul.f32 %v553, 1.442695
  %v555 = vpow.pop %v554
  %v556 = vadd.f32 %v555, 1.0
  %v557 = vrcp.pop %v556
  %v558 = vmul.f32 1.0, %v557
  %v559 = vsel %vm169, %v552, %v558
  %v560 = vmul.f32 %v559, %v468
  %562 = vrot.lane.b32.xlu0 %v559, 64
  %v563 = vpop.permute.xlu0 %562
  %v565 = vmul.f32 %v559, %v563
  %567 = vrot.lane.b32.xlu0 %v565, 32
  %v568 = vpop.permute.xlu0 %567
  %v570 = vadd.f32 %v560, %v568
  %v571 = vtanh.pop %v570
  %573 = vrot.lane.b32.xlu0 %v571, 64
  %v574 = vpop.permute.xlu0 %573
  %v576 = vmul.f32 %v559, %v574
  %v577 = vld [vmem:[#allocation2 + $0x20] sm:$0xff]
  %579 = vrot.lane.b32.xlu0 %v576, 32
  %v580 = vpop.permute.xlu0 %579
  %v581 = vsel %vm171, %v580, 0
  %583 = vmatprep.subr.mxu0 0.0
  %584 = vmatpush1.msra.mxu0 %v161
  %585 = vmatprep.subr.mxu0 0.0
  %586 = vmatpush1.msra.mxu0 %v162
  %587 = vmatprep.subr.mxu0 0.0
  %588 = vmatpush1.msra.mxu0 %v163
  %589 = vmatprep.subr.mxu0 0.0
  %590 = vmatpush1.msra.mxu0 %v164
  %591 = vmatprep.subr.mxu0 0.0
  %592 = vmatpush1.msra.mxu0 0.0
  %593 = vmatprep.subr.mxu0 0.0
  %594 = vmatpush1.msra.mxu0 0.0
  %595 = vmatprep.subr.mxu0 0.0
  %596 = vmatpush1.msra.mxu0 0.0
  %597 = vmatprep.subr.mxu0 0.0
  %598 = vmatpush1.msra.mxu0 0.0
  %599 = vmatprep.subr.mxu0 0.0
  %600 = vmatpush1.msra.mxu0 0.0
  %601 = vmatprep.subr.mxu0 0.0
  %602 = vmatpush1.msra.mxu0 0.0
  %603 = vmatprep.subr.mxu0 0.0
  %604 = vmatpush1.msra.mxu0 0.0
  %605 = vmatprep.subr.mxu0 0.0
  %606 = vmatpush1.msra.mxu0 0.0
  %607 = vmatprep.subr.mxu0 0.0
  %608 = vmatpush1.msra.mxu0 0.0
  %609 = vmatprep.subr.mxu0 0.0
  %610 = vmatpush1.msra.mxu0 0.0
  %611 = vmatprep.subr.mxu0 0.0
  %612 = vmatpush1.msra.mxu0 0.0
  %613 = vmatprep.subr.mxu0 0.0
  %614 = vmatpush1.msra.mxu0 0.0
  %615 = vmatprep.subr.mxu0 0.0
  %616 = vmatpush1.msra.mxu0 0.0
  %617 = vmatprep.subr.mxu0 0.0
  %618 = vmatpush1.msra.mxu0 0.0
  %619 = vmatprep.subr.mxu0 0.0
  %620 = vmatpush1.msra.mxu0 0.0
  %621 = vmatprep.subr.mxu0 0.0
  %622 = vmatpush1.msra.mxu0 0.0
  %623 = vmatprep.subr.mxu0 0.0
  %624 = vmatpush1.msra.mxu0 0.0
  %625 = vmatprep.subr.mxu0 0.0
  %626 = vmatpush1.msra.mxu0 0.0
  %627 = vmatprep.subr.mxu0 0.0
  %628 = vmatpush1.msra.mxu0 0.0
  %629 = vmatprep.subr.mxu0 0.0
  %630 = vmatpush1.msra.mxu0 0.0
  %631 = vmatprep.subr.mxu0 0.0
  %632 = vmatpush1.msra.mxu0 0.0
  %633 = vmatprep.subr.mxu0 0.0
  %634 = vmatpush1.msra.mxu0 0.0
  %635 = vmatprep.subr.mxu0 0.0
  %636 = vmatpush1.msra.mxu0 0.0
  %637 = vmatprep.subr.mxu0 0.0
  %638 = vmatpush1.msra.mxu0 0.0
  %639 = vmatprep.subr.mxu0 0.0
  %640 = vmatpush1.msra.mxu0 0.0
  %641 = vmatprep.subr.mxu0 0.0
  %642 = vmatpush1.msra.mxu0 0.0
  %643 = vmatprep.subr.mxu0 0.0
  %644 = vmatpush1.msra.mxu0 0.0
  %645 = vmatprep.subr.mxu0 0.0
  %646 = vmatpush1.msra.mxu0 0.0
  %647 = vmatprep.mubr.f32.mxu0 0.0
  %648 = vmatmul.mubr.f32.gmra.mrb[0].mxu0 %v581
  %v649 = vpop.f32.mrb[0].mxu0
  %v650 = vadd.f32 0.0, %v649
  %v651 = vpop.f32.mrb[0].mxu0
  %652 = vdwg.mxu0
  %v653 = vadd.f32 %v577, %v650
  %v654 = vtanh.pop %v653
  %v655 = vxor.u32 %v653, 2147483648
  %v656 = vmul.f32 %v655, 1.442695
  %v657 = vpow.pop %v656
  %v658 = vadd.f32 %v657, 1.0
  %v659 = vrcp.pop %v658
  %v660 = vmul.f32 1.0, %v659
  %v661 = vsel %vm169, %v654, %v660
  %v662 = vmul.f32 %v661, %v570
  %664 = vrot.lane.b32.xlu0 %v661, 64
  %v665 = vpop.permute.xlu0 %664
  %v667 = vmul.f32 %v661, %v665
  %669 = vrot.lane.b32.xlu0 %v667, 32
  %v670 = vpop.permute.xlu0 %669
  %v672 = vadd.f32 %v662, %v670
  %v673 = vtanh.pop %v672
  %675 = vrot.lane.b32.xlu0 %v673, 64
  %v676 = vpop.permute.xlu0 %675
  %v678 = vmul.f32 %v661, %v676
  %v679 = vld [vmem:[#allocation2 + $0x28] sm:$0xff]
  %681 = vrot.lane.b32.xlu0 %v678, 32
  %v682 = vpop.permute.xlu0 %681
  %v683 = vsel %vm171, %v682, 0
  %685 = vmatprep.subr.mxu0 0.0
  %686 = vmatpush1.msra.mxu0 %v161
  %687 = vmatprep.subr.mxu0 0.0
  %688 = vmatpush1.msra.mxu0 %v162
  %689 = vmatprep.subr.mxu0 0.0
  %690 = vmatpush1.msra.mxu0 %v163
  %691 = vmatprep.subr.mxu0 0.0
  %692 = vmatpush1.msra.mxu0 %v164
  %693 = vmatprep.subr.mxu0 0.0
  %694 = vmatpush1.msra.mxu0 0.0
  %695 = vmatprep.subr.mxu0 0.0
  %696 = vmatpush1.msra.mxu0 0.0
  %697 = vmatprep.subr.mxu0 0.0
  %698 = vmatpush1.msra.mxu0 0.0
  %699 = vmatprep.subr.mxu0 0.0
  %700 = vmatpush1.msra.mxu0 0.0
  %701 = vmatprep.subr.mxu0 0.0
  %702 = vmatpush1.msra.mxu0 0.0
  %703 = vmatprep.subr.mxu0 0.0
  %704 = vmatpush1.msra.mxu0 0.0
  %705 = vmatprep.subr.mxu0 0.0
  %706 = vmatpush1.msra.mxu0 0.0
  %707 = vmatprep.subr.mxu0 0.0
  %708 = vmatpush1.msra.mxu0 0.0
  %709 = vmatprep.subr.mxu0 0.0
  %710 = vmatpush1.msra.mxu0 0.0
  %711 = vmatprep.subr.mxu0 0.0
  %712 = vmatpush1.msra.mxu0 0.0
  %713 = vmatprep.subr.mxu0 0.0
  %714 = vmatpush1.msra.mxu0 0.0
  %715 = vmatprep.subr.mxu0 0.0
  %716 = vmatpush1.msra.mxu0 0.0
  %717 = vmatprep.subr.mxu0 0.0
  %718 = vmatpush1.msra.mxu0 0.0
  %719 = vmatprep.subr.mxu0 0.0
  %720 = vmatpush1.msra.mxu0 0.0
  %721 = vmatprep.subr.mxu0 0.0
  %722 = vmatpush1.msra.mxu0 0.0
  %723 = vmatprep.subr.mxu0 0.0
  %724 = vmatpush1.msra.mxu0 0.0
  %725 = vmatprep.subr.mxu0 0.0
  %726 = vmatpush1.msra.mxu0 0.0
  %727 = vmatprep.subr.mxu0 0.0
  %728 = vmatpush1.msra.mxu0 0.0
  %729 = vmatprep.subr.mxu0 0.0
  %730 = vmatpush1.msra.mxu0 0.0
  %731 = vmatprep.subr.mxu0 0.0
  %732 = vmatpush1.msra.mxu0 0.0
  %733 = vmatprep.subr.mxu0 0.0
  %734 = vmatpush1.msra.mxu0 0.0
  %735 = vmatprep.subr.mxu0 0.0
  %736 = vmatpush1.msra.mxu0 0.0
  %737 = vmatprep.subr.mxu0 0.0
  %738 = vmatpush1.msra.mxu0 0.0
  %739 = vmatprep.subr.mxu0 0.0
  %740 = vmatpush1.msra.mxu0 0.0
  %741 = vmatprep.subr.mxu0 0.0
  %742 = vmatpush1.msra.mxu0 0.0
  %743 = vmatprep.subr.mxu0 0.0
  %744 = vmatpush1.msra.mxu0 0.0
  %745 = vmatprep.subr.mxu0 0.0
  %746 = vmatpush1.msra.mxu0 0.0
  %747 = vmatprep.subr.mxu0 0.0
  %748 = vmatpush1.msra.mxu0 0.0
  %749 = vmatprep.mubr.f32.mxu0 0.0
  %750 = vmatmul.mubr.f32.gmra.mrb[0].mxu0 %v683
  %v751 = vpop.f32.mrb[0].mxu0
  %v752 = vadd.f32 0.0, %v751
  %v753 = vpop.f32.mrb[0].mxu0
  %754 = vdwg.mxu0
  %v755 = vadd.f32 %v679, %v752
  %v756 = vtanh.pop %v755
  %v757 = vxor.u32 %v755, 2147483648
  %v758 = vmul.f32 %v757, 1.442695
  %v759 = vpow.pop %v758
  %v760 = vadd.f32 %v759, 1.0
  %v761 = vrcp.pop %v760
  %v762 = vmul.f32 1.0, %v761
  %v763 = vsel %vm169, %v756, %v762
  %v764 = vmul.f32 %v763, %v672
  %766 = vrot.lane.b32.xlu0 %v763, 64
  %v767 = vpop.permute.xlu0 %766
  %v769 = vmul.f32 %v763, %v767
  %771 = vrot.lane.b32.xlu0 %v769, 32
  %v772 = vpop.permute.xlu0 %771
  %v774 = vadd.f32 %v764, %v772
  %v775 = vtanh.pop %v774
  %777 = vrot.lane.b32.xlu0 %v775, 64
  %v778 = vpop.permute.xlu0 %777
  %v780 = vmul.f32 %v763, %v778
  %v781 = vld [vmem:[#allocation2 + $0x30] sm:$0xff]
  %783 = vrot.lane.b32.xlu0 %v780, 32
  %v784 = vpop.permute.xlu0 %783
  %v785 = vsel %vm171, %v784, 0
  %787 = vmatprep.subr.mxu0 0.0
  %788 = vmatpush1.msra.mxu0 %v161
  %789 = vmatprep.subr.mxu0 0.0
  %790 = vmatpush1.msra.mxu0 %v162
  %791 = vmatprep.subr.mxu0 0.0
  %792 = vmatpush1.msra.mxu0 %v163
  %793 = vmatprep.subr.mxu0 0.0
  %794 = vmatpush1.msra.mxu0 %v164
  %795 = vmatprep.subr.mxu0 0.0
  %796 = vmatpush1.msra.mxu0 0.0
  %797 = vmatprep.subr.mxu0 0.0
  %798 = vmatpush1.msra.mxu0 0.0
  %799 = vmatprep.subr.mxu0 0.0
  %800 = vmatpush1.msra.mxu0 0.0
  %801 = vmatprep.subr.mxu0 0.0
  %802 = vmatpush1.msra.mxu0 0.0
  %803 = vmatprep.subr.mxu0 0.0
  %804 = vmatpush1.msra.mxu0 0.0
  %805 = vmatprep.subr.mxu0 0.0
  %806 = vmatpush1.msra.mxu0 0.0
  %807 = vmatprep.subr.mxu0 0.0
  %808 = vmatpush1.msra.mxu0 0.0
  %809 = vmatprep.subr.mxu0 0.0
  %810 = vmatpush1.msra.mxu0 0.0
  %811 = vmatprep.subr.mxu0 0.0
  %812 = vmatpush1.msra.mxu0 0.0
  %813 = vmatprep.subr.mxu0 0.0
  %814 = vmatpush1.msra.mxu0 0.0
  %815 = vmatprep.subr.mxu0 0.0
  %816 = vmatpush1.msra.mxu0 0.0
  %817 = vmatprep.subr.mxu0 0.0
  %818 = vmatpush1.msra.mxu0 0.0
  %819 = vmatprep.subr.mxu0 0.0
  %820 = vmatpush1.msra.mxu0 0.0
  %821 = vmatprep.subr.mxu0 0.0
  %822 = vmatpush1.msra.mxu0 0.0
  %823 = vmatprep.subr.mxu0 0.0
  %824 = vmatpush1.msra.mxu0 0.0
  %825 = vmatprep.subr.mxu0 0.0
  %826 = vmatpush1.msra.mxu0 0.0
  %827 = vmatprep.subr.mxu0 0.0
  %828 = vmatpush1.msra.mxu0 0.0
  %829 = vmatprep.subr.mxu0 0.0
  %830 = vmatpush1.msra.mxu0 0.0
  %831 = vmatprep.subr.mxu0 0.0
  %832 = vmatpush1.msra.mxu0 0.0
  %833 = vmatprep.subr.mxu0 0.0
  %834 = vmatpush1.msra.mxu0 0.0
  %835 = vmatprep.subr.mxu0 0.0
  %836 = vmatpush1.msra.mxu0 0.0
  %837 = vmatprep.subr.mxu0 0.0
  %838 = vmatpush1.msra.mxu0 0.0
  %839 = vmatprep.subr.mxu0 0.0
  %840 = vmatpush1.msra.mxu0 0.0
  %841 = vmatprep.subr.mxu0 0.0
  %842 = vmatpush1.msra.mxu0 0.0
  %843 = vmatprep.subr.mxu0 0.0
  %844 = vmatpush1.msra.mxu0 0.0
  %845 = vmatprep.subr.mxu0 0.0
  %846 = vmatpush1.msra.mxu0 0.0
  %847 = vmatprep.subr.mxu0 0.0
  %848 = vmatpush1.msra.mxu0 0.0
  %849 = vmatprep.subr.mxu0 0.0
  %850 = vmatpush1.msra.mxu0 0.0
  %851 = vmatprep.mubr.f32.mxu0 0.0
  %852 = vmatmul.mubr.f32.gmra.mrb[0].mxu0 %v785
  %v853 = vpop.f32.mrb[0].mxu0
  %v854 = vadd.f32 0.0, %v853
  %v855 = vpop.f32.mrb[0].mxu0
  %856 = vdwg.mxu0
  %v857 = vadd.f32 %v781, %v854
  %v858 = vtanh.pop %v857
  %v859 = vxor.u32 %v857, 2147483648
  %v860 = vmul.f32 %v859, 1.442695
  %v861 = vpow.pop %v860
  %v862 = vadd.f32 %v861, 1.0
  %v863 = vrcp.pop %v862
  %v864 = vmul.f32 1.0, %v863
  %v865 = vsel %vm169, %v858, %v864
  %v866 = vmul.f32 %v865, %v774
  %868 = vrot.lane.b32.xlu0 %v865, 64
  %v869 = vpop.permute.xlu0 %868
  %v871 = vmul.f32 %v865, %v869
  %873 = vrot.lane.b32.xlu0 %v871, 32
  %v874 = vpop.permute.xlu0 %873
  %v876 = vadd.f32 %v866, %v874
  %v877 = vtanh.pop %v876
  %879 = vrot.lane.b32.xlu0 %v877, 64
  %v880 = vpop.permute.xlu0 %879
  %v882 = vmul.f32 %v865, %v880
  %v883 = vld [vmem:[#allocation2 + $0x38] sm:$0xff]
  %885 = vrot.lane.b32.xlu0 %v882, 32
  %v886 = vpop.permute.xlu0 %885
  %v887 = vsel %vm171, %v886, 0
  %889 = vmatprep.subr.mxu0 0.0
  %890 = vmatpush1.msra.mxu0 %v161
  %891 = vmatprep.subr.mxu0 0.0
  %892 = vmatpush1.msra.mxu0 %v162
  %893 = vmatprep.subr.mxu0 0.0
  %894 = vmatpush1.msra.mxu0 %v163
  %895 = vmatprep.subr.mxu0 0.0
  %896 = vmatpush1.msra.mxu0 %v164
  %897 = vmatprep.subr.mxu0 0.0
  %898 = vmatpush1.msra.mxu0 0.0
  %899 = vmatprep.subr.mxu0 0.0
  %900 = vmatpush1.msra.mxu0 0.0
  %901 = vmatprep.subr.mxu0 0.0
  %902 = vmatpush1.msra.mxu0 0.0
  %903 = vmatprep.subr.mxu0 0.0
  %904 = vmatpush1.msra.mxu0 0.0
  %905 = vmatprep.subr.mxu0 0.0
  %906 = vmatpush1.msra.mxu0 0.0
  %907 = vmatprep.subr.mxu0 0.0
  %908 = vmatpush1.msra.mxu0 0.0
  %909 = vmatprep.subr.mxu0 0.0
  %910 = vmatpush1.msra.mxu0 0.0
  %911 = vmatprep.subr.mxu0 0.0
  %912 = vmatpush1.msra.mxu0 0.0
  %913 = vmatprep.subr.mxu0 0.0
  %914 = vmatpush1.msra.mxu0 0.0
  %915 = vmatprep.subr.mxu0 0.0
  %916 = vmatpush1.msra.mxu0 0.0
  %917 = vmatprep.subr.mxu0 0.0
  %918 = vmatpush1.msra.mxu0 0.0
  %919 = vmatprep.subr.mxu0 0.0
  %920 = vmatpush1.msra.mxu0 0.0
  %921 = vmatprep.subr.mxu0 0.0
  %922 = vmatpush1.msra.mxu0 0.0
  %923 = vmatprep.subr.mxu0 0.0
  %924 = vmatpush1.msra.mxu0 0.0
  %925 = vmatprep.subr.mxu0 0.0
  %926 = vmatpush1.msra.mxu0 0.0
  %927 = vmatprep.subr.mxu0 0.0
  %928 = vmatpush1.msra.mxu0 0.0
  %929 = vmatprep.subr.mxu0 0.0
  %930 = vmatpush1.msra.mxu0 0.0
  %931 = vmatprep.subr.mxu0 0.0
  %932 = vmatpush1.msra.mxu0 0.0
  %933 = vmatprep.subr.mxu0 0.0
  %934 = vmatpush1.msra.mxu0 0.0
  %935 = vmatprep.subr.mxu0 0.0
  %936 = vmatpush1.msra.mxu0 0.0
  %937 = vmatprep.subr.mxu0 0.0
  %938 = vmatpush1.msra.mxu0 0.0
  %939 = vmatprep.subr.mxu0 0.0
  %940 = vmatpush1.msra.mxu0 0.0
  %941 = vmatprep.subr.mxu0 0.0
  %942 = vmatpush1.msra.mxu0 0.0
  %943 = vmatprep.subr.mxu0 0.0
  %944 = vmatpush1.msra.mxu0 0.0
  %945 = vmatprep.subr.mxu0 0.0
  %946 = vmatpush1.msra.mxu0 0.0
  %947 = vmatprep.subr.mxu0 0.0
  %948 = vmatpush1.msra.mxu0 0.0
  %949 = vmatprep.subr.mxu0 0.0
  %950 = vmatpush1.msra.mxu0 0.0
  %951 = vmatprep.subr.mxu0 0.0
  %952 = vmatpush1.msra.mxu0 0.0
  %953 = vmatprep.mubr.f32.mxu0 0.0
  %954 = vmatmul.mubr.f32.gmra.mrb[0].mxu0 %v887
  %v955 = vpop.f32.mrb[0].mxu0
  %v956 = vadd.f32 0.0, %v955
  %v957 = vpop.f32.mrb[0].mxu0
  %958 = vdwg.mxu0
  %v959 = vadd.f32 %v883, %v956
  %v960 = vtanh.pop %v959
  %v961 = vxor.u32 %v959, 2147483648
  %v962 = vmul.f32 %v961, 1.442695
  %v963 = vpow.pop %v962
  %v964 = vadd.f32 %v963, 1.0
  %v965 = vrcp.pop %v964
  %v966 = vmul.f32 1.0, %v965
  %v967 = vsel %vm169, %v960, %v966
  %v968 = vmul.f32 %v967, %v876
  %970 = vrot.lane.b32.xlu0 %v967, 64
  %v971 = vpop.permute.xlu0 %970
  %v973 = vmul.f32 %v967, %v971
  %975 = vrot.lane.b32.xlu0 %v973, 32
  %v976 = vpop.permute.xlu0 %975
  %v978 = vadd.f32 %v968, %v976
  %v979 = vtanh.pop %v978
  %981 = vrot.lane.b32.xlu0 %v979, 64
  %v982 = vpop.permute.xlu0 %981
  %v984 = vmul.f32 %v967, %v982
  %986 = vrot.lane.b32.xlu0 %v984, 32
  %v987 = vpop.permute.xlu0 %986
  %989 = vst.msk [vmem:[%s4] sm:$0xff] %vm171, %v987
  // Predicated region
  $region18: #{lstm_regressor_forward.1} parent=0 // pred_check
    _
  $region19: #{lstm_regressor_forward.1} parent=0 // pred_check_branch
    %991 = sbr.rel (0) target = $region21
  $region20: #{lstm_regressor_forward.1} parent=0 // pred_region
    _
  $region21: #{lstm_regressor_forward.1} parent=0 // pred_fallthru
    _
  // Predicated region
  $region22: #{lstm_regressor_forward.1} parent=0 // pred_check
    _
  $region23: #{lstm_regressor_forward.1} parent=0 // pred_check_branch
    %993 = sbr.rel (0) target = $region25
  $region24: #{lstm_regressor_forward.1} parent=0 // pred_region
    _
  $region25: #{lstm_regressor_forward.1} parent=0 // pred_fallthru
    _

</llo_original>
